<compile_context>
chip_gen: v6e
topology: v6e:2x2x1
jax: 0.10.0
libtpu: 0.0.40
codegen_flags: <defaults>
</compile_context>

<pallas_src>
import jax
import jax.numpy as jnp
from jax.experimental import pallas as pl
from jax.experimental.pallas import tpu as pltpu


def _round_up(x, m):
    return ((x + m - 1) // m) * m


# -----------------------------------------------------------------------------
# Kernel 1: sequential tanh-RNN recurrence over one (Tc, Bb, Hp) chunk of
#           pre-gathered input embeddings.
# -----------------------------------------------------------------------------
def _rnn_recurrence_kernel(x_ref,      # VMEM (Tc, Bb, Hp) bf16  gathered embeddings
                           whh_ref,    # VMEM (Hp, Hp)     bf16  W_hh^T (padded)
                           b_ref,      # VMEM (1, Hp)      f32   b_ih + b_hh (padded)
                           h_out_ref,  # VMEM (Tc, Bb, Hp) bf16  hidden states out
                           h_ref):     # VMEM (Bb, Hp)     bf16  carried hidden state
    # Grid = (batch_blocks, Tp // Tc); time axis (1) is sequential ("arbitrary").
    # Init the carry whenever a new batch block starts its time sweep.
    @pl.when(pl.program_id(1) == 0)
    def _():
        h_ref[...] = jnp.zeros_like(h_ref)

    Tc, Bb, Hp = x_ref.shape
    whh = whh_ref[...]                                  # bf16 MXU operand, loaded once
    bias = jnp.broadcast_to(b_ref[...], (Bb, Hp))       # hoisted: no per-step broadcast

    def step(j, h):                                     # h: (Bb, Hp) bf16
        x_t = x_ref[j]                                  # (Bb, Hp) bf16, full slab load
        pre = (x_t.astype(jnp.float32)
               + jnp.dot(h, whh, preferred_element_type=jnp.float32)
               + bias)                                  # f32 accumulation
        h_new = jnp.tanh(pre).astype(h_out_ref.dtype)   # tanh in f32, store bf16
        h_out_ref[j] = h_new                            # unmasked (Bb, Hp) store
        return h_new

    h_last = jax.lax.fori_loop(0, Tc, step, h_ref[...], unroll=True)
    h_ref[...] = h_last


# -----------------------------------------------------------------------------
# Kernel 2: hoisted output head -- lane-dense tiled matmul over all rows.
# -----------------------------------------------------------------------------
def _head_matmul_kernel(h_ref, w_ref, b_ref, o_ref):
    o_ref[...] = (jnp.dot(h_ref[...], w_ref[...],
                          preferred_element_type=jnp.float32)
                  + b_ref[...]).astype(o_ref.dtype)


def recurrent_lm_forward(x_tokens, params, *, batch_blocks=1):
    """Forward pass of RecurrentLM.

    x_tokens: (B, T) int token ids (assumed in [0, V); clamped for safety).
    params: dict with W_ih (H,V), W_hh (H,H), b_ih (H,), b_hh (H,),
            W_out (V,H), b_out (V,).
    batch_blocks: set to 2 on v7x to shard the recurrence over batch across
                  the two TensorCores (time cannot be parallelized).
    Returns logits of shape (B, T, V) float32.
    """
    W_ih, W_hh = params["W_ih"], params["W_hh"]
    b_ih, b_hh = params["b_ih"], params["b_hh"]
    W_out, b_out = params["W_out"], params["b_out"]

    H, V = W_ih.shape
    B, T = x_tokens.shape

    f32, bf16 = jnp.float32, jnp.bfloat16

    Hp = _round_up(H, 128)                     # lane-dense hidden
    Vp = _round_up(V, 128)                     # lane-dense logits
    Bp = _round_up(B, 8 * batch_blocks)        # sublane-dense batch
    Bb = Bp // batch_blocks
    Tp = _round_up(T, 8)                       # padded time (extra steps discarded)
    Tc = next(c for c in (64, 32, 16, 8) if Tp % c == 0)   # never degrades to 1

    # Padded, pre-transposed weights: bf16 MXU operands, f32 biases.
    # Zero padding is exact: padded hidden units stay tanh(0)=0 and padded
    # weight rows/cols contribute nothing.
    wih_p = jnp.zeros((V, Hp), bf16).at[:, :H].set(W_ih.T.astype(bf16))
    whh_p = jnp.zeros((Hp, Hp), bf16).at[:H, :H].set(W_hh.T.astype(bf16))
    b_p = jnp.zeros((1, Hp), f32).at[0, :H].set((b_ih + b_hh).astype(f32))
    wout_p = jnp.zeros((Hp, Vp), bf16).at[:H, :V].set(W_out.T.astype(bf16))
    bout_p = jnp.zeros((1, Vp), f32).at[0, :V].set(b_out.astype(f32))

    # Token ids, time-major and padded (pad tokens use id 0; their outputs are
    # sliced off and never feed earlier steps). Clamp so an OOB id can't read
    # an arbitrary row (reference one_hot zero-fills; torch would error).
    tok_tm = (jnp.zeros((Tp, Bp), jnp.int32)
              .at[:T, :B].set(jnp.asarray(x_tokens, jnp.int32).T))
    tok_tm = jnp.clip(tok_tm, 0, V - 1)

    # Hoisted embedding gather == one_hot(x) @ W_ih^T (plain XLA gather).
    x_emb = jnp.take(wih_p, tok_tm, axis=0)   # (Tp, Bp, Hp) bf16

    # ---- Pass 1: recurrence -> hidden states (Tp, Bp, Hp) bf16 ---------------
    rnn_cost = pl.CostEstimate(
        flops=2 * Tp * Bp * Hp * Hp + 3 * Tp * Bp * Hp,
        transcendentals=Tp * Bp * Hp,
        bytes_accessed=2 * (Tp * Bp * Hp * 2) + 2 * Hp * Hp + 4 * Hp,
    )
    # NOTE: for large Tc*Bb*Hp or Hp, raise vmem_limit_bytes in CompilerParams
    # (default scoped VMEM is 16-32 MiB) or shrink Tc; fine at these shapes.
    h_tbh = pl.pallas_call(
        _rnn_recurrence_kernel,
        out_shape=jax.ShapeDtypeStruct((Tp, Bp, Hp), bf16),
        grid_spec=pltpu.PrefetchScalarGridSpec(
            num_scalar_prefetch=0,
            grid=(batch_blocks, Tp // Tc),
            in_specs=[
                pl.BlockSpec((Tc, Bb, Hp), lambda b, t: (t, b, 0)),   # embeddings
                pl.BlockSpec((Hp, Hp), lambda b, t: (0, 0)),          # W_hh^T, resident
                pl.BlockSpec((1, Hp), lambda b, t: (0, 0)),           # fused bias
            ],
            out_specs=pl.BlockSpec((Tc, Bb, Hp), lambda b, t: (t, b, 0)),
            scratch_shapes=[pltpu.VMEM((Bb, Hp), bf16)],              # carried h
        ),
        compiler_params=pltpu.CompilerParams(
            # Batch blocks are independent (v7x: split across TCs); time must
            # run sequentially because of the carried VMEM hidden state.
            dimension_semantics=("parallel", "arbitrary"),
        ),
        cost_estimate=rnn_cost,
    )(x_emb, whh_p, b_p)

    # ---- Pass 2: hoisted output head ------------------------------------------
    # Cheap, narrow (Hp-wide, bf16) transpose so logits come out batch-major
    # directly; no V-wide logits transpose anywhere.
    rows = Bp * Tp
    h_rows = jnp.transpose(h_tbh, (1, 0, 2)).reshape(rows, Hp)

    tr = next(c for c in (512, 256, 128, 64) if rows % c == 0)   # rows % 64 == 0 always
    tv = next(c for c in (512, 256, 128) if Vp % c == 0)

    head_cost = pl.CostEstimate(
        flops=2 * rows * Hp * Vp,
        transcendentals=0,
        bytes_accessed=(Vp // tv) * rows * Hp * 2 + Hp * Vp * 2 + rows * Vp * 4 + 4 * Vp,
    )
    logits2d = pl.pallas_call(
        _head_matmul_kernel,
        out_shape=jax.ShapeDtypeStruct((rows, Vp), f32),
        # Vocab tiles OUTER, row tiles INNER: the (Hp, tv) W_out^T block index
        # is constant across the inner sweep, so W_out stays VMEM-resident and
        # only the cheaper h rows are re-streamed.
        grid=(Vp // tv, rows // tr),
        in_specs=[
            pl.BlockSpec((tr, Hp), lambda c, r: (r, 0)),
            pl.BlockSpec((Hp, tv), lambda c, r: (0, c)),
            pl.BlockSpec((1, tv), lambda c, r: (0, c)),
        ],
        out_specs=pl.BlockSpec((tr, tv), lambda c, r: (r, c)),
        compiler_params=pltpu.CompilerParams(
            dimension_semantics=("parallel", "parallel"),
        ),
        cost_estimate=head_cost,
    )(h_rows, wout_p, bout_p)

    return logits2d.reshape(Bp, Tp, Vp)[:B, :T, :V]


def _reference_forward(x_tokens, params):
    """Plain-JAX f32 reference (mirrors torch one_hot -> nn.RNN(tanh) -> Linear)."""
    W_ih, W_hh = params["W_ih"], params["W_hh"]
    b_ih, b_hh = params["b_ih"], params["b_hh"]
    W_out, b_out = params["W_out"], params["b_out"]
    H, V = W_ih.shape
    B, T = x_tokens.shape
    x = jax.nn.one_hot(x_tokens, V, dtype=jnp.float32)            # (B, T, V)

    def step(h, x_t):
        h_new = jnp.tanh(x_t @ W_ih.T + b_ih + h @ W_hh.T + b_hh)
        return h_new, h_new @ W_out.T + b_out

    h0 = jnp.zeros((B, H), jnp.float32)
    _, ys = jax.lax.scan(step, h0, jnp.transpose(x, (1, 0, 2)))
    return jnp.transpose(ys, (1, 0, 2))


# TODO(synk): RecurrentLM.predict (host-side autoregressive sampling loop over a
# Python vocab object) is not kernelized; only forward() is implemented here.

if __name__ == "__main__":
    # Small shapes implied by the forward: tokens (batch, num_steps).
    B, T, V, H = 2, 8, 32, 32

    key = jax.random.PRNGKey(0)
    k_tok, k1, k2, k3, k4, k5, k6 = jax.random.split(key, 7)

    x_tokens = jax.random.randint(k_tok, (B, T), 0, V, dtype=jnp.int32)

    scale = 0.1
    params = {
        "W_ih": scale * jax.random.normal(k1, (H, V), jnp.float32),
        "W_hh": scale * jax.random.normal(k2, (H, H), jnp.float32),
        "b_ih": scale * jax.random.normal(k3, (H,), jnp.float32),
        "b_hh": scale * jax.random.normal(k4, (H,), jnp.float32),
        "W_out": scale * jax.random.normal(k5, (V, H), jnp.float32),
        "b_out": scale * jax.random.normal(k6, (V,), jnp.float32),
    }

    logits = recurrent_lm_forward(x_tokens, params)
    logits = jax.block_until_ready(logits)

    ref = _reference_forward(x_tokens, params)
    assert logits.shape == (B, T, V)
    # bf16 MXU operands -> slightly looser tolerance than the f32 reference.
    assert jnp.allclose(logits, ref, atol=2e-2, rtol=2e-2), "mismatch vs reference"

    print("KERNEL_OK")
</pallas_src>

<mosaic_0001>
module attributes {stable_mosaic.version = 11 : i64} {
  func.func @_rnn_recurrence_kernel(%arg0: i32, %arg1: i32, %arg2: memref<8x8x128xbf16, #tpu.memory_space<vmem>>, %arg3: memref<128x128xbf16, #tpu.memory_space<vmem>>, %arg4: memref<1x128xf32, #tpu.memory_space<vmem>>, %arg5: memref<8x8x128xbf16, #tpu.memory_space<vmem>>, %arg6: memref<8x128xbf16, #tpu.memory_space<vmem>>) attributes {dimension_semantics = [#tpu.dimension_semantics<parallel>, #tpu.dimension_semantics<arbitrary>], iteration_bounds = array<i64: 1, 1>, scalar_prefetch = 0 : i64, scratch_operands = 1 : i64, tpu.core_type = #tpu.core_type<tc>, window_params = [{transform_indices = @transform_0, window_bounds = array<i64: 8, 8, 128>}, {pipeline_mode = #tpu.pipeline_mode<synchronous>, transform_indices = @transform_1, window_bounds = array<i64: 128, 128>}, {pipeline_mode = #tpu.pipeline_mode<synchronous>, transform_indices = @transform_2, window_bounds = array<i64: 1, 128>}, {transform_indices = @transform_3, window_bounds = array<i64: 8, 8, 128>}]} {
    %c0_i32 = arith.constant 0 : i32
    %0 = arith.cmpi eq, %arg1, %c0_i32 : i32
    %1 = arith.extui %0 : i1 to i32
    %c0_i32_0 = arith.constant 0 : i32
    %2 = arith.cmpi ne, %1, %c0_i32_0 : i32
    scf.if %2 {
      %cst_48 = arith.constant 0.000000e+00 : bf16
      %113 = vector.broadcast %cst_48 : bf16 to vector<8x128xbf16>
      %c0_49 = arith.constant 0 : index
      %c0_50 = arith.constant 0 : index
      %114 = vector.load %arg6[%c0_49, %c0_50] : memref<8x128xbf16, #tpu.memory_space<vmem>>, vector<8x128xbf16>
      tpu.vector_store %arg6[%c0_49, %c0_50], %113 {strides = array<i32>} : memref<8x128xbf16, #tpu.memory_space<vmem>>, vector<8x128xbf16>,
    } else {
    }
    %c0 = arith.constant 0 : index
    %c0_1 = arith.constant 0 : index
    %3 = vector.load %arg3[%c0, %c0_1] : memref<128x128xbf16, #tpu.memory_space<vmem>>, vector<128x128xbf16>
    %c0_2 = arith.constant 0 : index
    %c0_3 = arith.constant 0 : index
    %4 = vector.load %arg4[%c0_2, %c0_3] : memref<1x128xf32, #tpu.memory_space<vmem>>, vector<1x128xf32>
    %5 = vector.shape_cast %4 : vector<1x128xf32> to vector<1x128xf32>
    %6 = vector.broadcast %5 : vector<1x128xf32> to vector<8x128xf32>
    %c0_4 = arith.constant 0 : index
    %c0_5 = arith.constant 0 : index
    %7 = vector.load %arg6[%c0_4, %c0_5] : memref<8x128xbf16, #tpu.memory_space<vmem>>, vector<8x128xbf16>
    %c0_i32_6 = arith.constant 0 : i32
    %8 = arith.index_cast %c0_i32_6 : i32 to index
    %c0_7 = arith.constant 0 : index
    %c0_8 = arith.constant 0 : index
    %9 = vector.load %arg2[%8, %c0_7, %c0_8] : memref<8x8x128xbf16, #tpu.memory_space<vmem>>, vector<1x8x128xbf16>
    %10 = vector.shape_cast %9 : vector<1x8x128xbf16> to vector<8x128xbf16>
    %11 = arith.extf %10 : vector<8x128xbf16> to vector<8x128xf32>
    %cst = arith.constant dense<0.000000e+00> : vector<8x128xf32>
    %12 = tpu.matmul %7, %3, %cst {dimension_numbers = #tpu.dot_dimension_numbers<[1], [0], [0], [1], [0, 0, 1, 1], [], []>} : vector<8x128xbf16>, vector<128x128xbf16>, vector<8x128xf32> -> vector<8x128xf32>
    %13 = arith.addf %11, %12 : vector<8x128xf32>
    %14 = arith.addf %13, %6 : vector<8x128xf32>
    %15 = math.tanh %14 : vector<8x128xf32>
    %16 = arith.truncf %15 : vector<8x128xf32> to vector<8x128xbf16>
    %17 = arith.index_cast %c0_i32_6 : i32 to index
    %c0_9 = arith.constant 0 : index
    %c0_10 = arith.constant 0 : index
    %18 = vector.load %arg5[%17, %c0_9, %c0_10] : memref<8x8x128xbf16, #tpu.memory_space<vmem>>, vector<1x8x128xbf16>
    %19 = vector.shape_cast %18 : vector<1x8x128xbf16> to vector<8x128xbf16>
    %20 = vector.shape_cast %16 : vector<8x128xbf16> to vector<1x8x128xbf16>
    tpu.vector_store %arg5[%17, %c0_9, %c0_10], %20 {strides = array<i32>} : memref<8x8x128xbf16, #tpu.memory_space<vmem>>, vector<1x8x128xbf16>,
    %c1_i32 = arith.constant 1 : i32
    %21 = arith.index_cast %c1_i32 : i32 to index
    %c0_11 = arith.constant 0 : index
    %c0_12 = arith.constant 0 : index
    %22 = vector.load %arg2[%21, %c0_11, %c0_12] : memref<8x8x128xbf16, #tpu.memory_space<vmem>>, vector<1x8x128xbf16>
    %23 = vector.shape_cast %22 : vector<1x8x128xbf16> to vector<8x128xbf16>
    %24 = arith.extf %23 : vector<8x128xbf16> to vector<8x128xf32>
    %cst_13 = arith.constant dense<0.000000e+00> : vector<8x128xf32>
    %25 = tpu.matmul %16, %3, %cst_13 {dimension_numbers = #tpu.dot_dimension_numbers<[1], [0], [0], [1], [0, 0, 1, 1], [], []>} : vector<8x128xbf16>, vector<128x128xbf16>, vector<8x128xf32> -> vector<8x128xf32>
    %26 = arith.addf %24, %25 : vector<8x128xf32>
    %27 = arith.addf %26, %6 : vector<8x128xf32>
    %28 = math.tanh %27 : vector<8x128xf32>
    %29 = arith.truncf %28 : vector<8x128xf32> to vector<8x128xbf16>
    %30 = arith.index_cast %c1_i32 : i32 to index
    %c0_14 = arith.constant 0 : index
    %c0_15 = arith.constant 0 : index
    %31 = vector.load %arg5[%30, %c0_14, %c0_15] : memref<8x8x128xbf16, #tpu.memory_space<vmem>>, vector<1x8x128xbf16>
    %32 = vector.shape_cast %31 : vector<1x8x128xbf16> to vector<8x128xbf16>
    %33 = vector.shape_cast %29 : vector<8x128xbf16> to vector<1x8x128xbf16>
    tpu.vector_store %arg5[%30, %c0_14, %c0_15], %33 {strides = array<i32>} : memref<8x8x128xbf16, #tpu.memory_space<vmem>>, vector<1x8x128xbf16>,
    %c2_i32 = arith.constant 2 : i32
    %34 = arith.index_cast %c2_i32 : i32 to index
    %c0_16 = arith.constant 0 : index
    %c0_17 = arith.constant 0 : index
    %35 = vector.load %arg2[%34, %c0_16, %c0_17] : memref<8x8x128xbf16, #tpu.memory_space<vmem>>, vector<1x8x128xbf16>
    %36 = vector.shape_cast %35 : vector<1x8x128xbf16> to vector<8x128xbf16>
    %37 = arith.extf %36 : vector<8x128xbf16> to vector<8x128xf32>
    %cst_18 = arith.constant dense<0.000000e+00> : vector<8x128xf32>
    %38 = tpu.matmul %29, %3, %cst_18 {dimension_numbers = #tpu.dot_dimension_numbers<[1], [0], [0], [1], [0, 0, 1, 1], [], []>} : vector<8x128xbf16>, vector<128x128xbf16>, vector<8x128xf32> -> vector<8x128xf32>
    %39 = arith.addf %37, %38 : vector<8x128xf32>
    %40 = arith.addf %39, %6 : vector<8x128xf32>
    %41 = math.tanh %40 : vector<8x128xf32>
    %42 = arith.truncf %41 : vector<8x128xf32> to vector<8x128xbf16>
    %43 = arith.index_cast %c2_i32 : i32 to index
    %c0_19 = arith.constant 0 : index
    %c0_20 = arith.constant 0 : index
    %44 = vector.load %arg5[%43, %c0_19, %c0_20] : memref<8x8x128xbf16, #tpu.memory_space<vmem>>, vector<1x8x128xbf16>
    %45 = vector.shape_cast %44 : vector<1x8x128xbf16> to vector<8x128xbf16>
    %46 = vector.shape_cast %42 : vector<8x128xbf16> to vector<1x8x128xbf16>
    tpu.vector_store %arg5[%43, %c0_19, %c0_20], %46 {strides = array<i32>} : memref<8x8x128xbf16, #tpu.memory_space<vmem>>, vector<1x8x128xbf16>,
    %c3_i32 = arith.constant 3 : i32
    %47 = arith.index_cast %c3_i32 : i32 to index
    %c0_21 = arith.constant 0 : index
    %c0_22 = arith.constant 0 : index
    %48 = vector.load %arg2[%47, %c0_21, %c0_22] : memref<8x8x128xbf16, #tpu.memory_space<vmem>>, vector<1x8x128xbf16>
    %49 = vector.shape_cast %48 : vector<1x8x128xbf16> to vector<8x128xbf16>
    %50 = arith.extf %49 : vector<8x128xbf16> to vector<8x128xf32>
    %cst_23 = arith.constant dense<0.000000e+00> : vector<8x128xf32>
    %51 = tpu.matmul %42, %3, %cst_23 {dimension_numbers = #tpu.dot_dimension_numbers<[1], [0], [0], [1], [0, 0, 1, 1], [], []>} : vector<8x128xbf16>, vector<128x128xbf16>, vector<8x128xf32> -> vector<8x128xf32>
    %52 = arith.addf %50, %51 : vector<8x128xf32>
    %53 = arith.addf %52, %6 : vector<8x128xf32>
    %54 = math.tanh %53 : vector<8x128xf32>
    %55 = arith.truncf %54 : vector<8x128xf32> to vector<8x128xbf16>
    %56 = arith.index_cast %c3_i32 : i32 to index
    %c0_24 = arith.constant 0 : index
    %c0_25 = arith.constant 0 : index
    %57 = vector.load %arg5[%56, %c0_24, %c0_25] : memref<8x8x128xbf16, #tpu.memory_space<vmem>>, vector<1x8x128xbf16>
    %58 = vector.shape_cast %57 : vector<1x8x128xbf16> to vector<8x128xbf16>
    %59 = vector.shape_cast %55 : vector<8x128xbf16> to vector<1x8x128xbf16>
    tpu.vector_store %arg5[%56, %c0_24, %c0_25], %59 {strides = array<i32>} : memref<8x8x128xbf16, #tpu.memory_space<vmem>>, vector<1x8x128xbf16>,
    %c4_i32 = arith.constant 4 : i32
    %60 = arith.index_cast %c4_i32 : i32 to index
    %c0_26 = arith.constant 0 : index
    %c0_27 = arith.constant 0 : index
    %61 = vector.load %arg2[%60, %c0_26, %c0_27] : memref<8x8x128xbf16, #tpu.memory_space<vmem>>, vector<1x8x128xbf16>
    %62 = vector.shape_cast %61 : vector<1x8x128xbf16> to vector<8x128xbf16>
    %63 = arith.extf %62 : vector<8x128xbf16> to vector<8x128xf32>
    %cst_28 = arith.constant dense<0.000000e+00> : vector<8x128xf32>
    %64 = tpu.matmul %55, %3, %cst_28 {dimension_numbers = #tpu.dot_dimension_numbers<[1], [0], [0], [1], [0, 0, 1, 1], [], []>} : vector<8x128xbf16>, vector<128x128xbf16>, vector<8x128xf32> -> vector<8x128xf32>
    %65 = arith.addf %63, %64 : vector<8x128xf32>
    %66 = arith.addf %65, %6 : vector<8x128xf32>
    %67 = math.tanh %66 : vector<8x128xf32>
    %68 = arith.truncf %67 : vector<8x128xf32> to vector<8x128xbf16>
    %69 = arith.index_cast %c4_i32 : i32 to index
    %c0_29 = arith.constant 0 : index
    %c0_30 = arith.constant 0 : index
    %70 = vector.load %arg5[%69, %c0_29, %c0_30] : memref<8x8x128xbf16, #tpu.memory_space<vmem>>, vector<1x8x128xbf16>
    %71 = vector.shape_cast %70 : vector<1x8x128xbf16> to vector<8x128xbf16>
    %72 = vector.shape_cast %68 : vector<8x128xbf16> to vector<1x8x128xbf16>
    tpu.vector_store %arg5[%69, %c0_29, %c0_30], %72 {strides = array<i32>} : memref<8x8x128xbf16, #tpu.memory_space<vmem>>, vector<1x8x128xbf16>,
    %c5_i32 = arith.constant 5 : i32
    %73 = arith.index_cast %c5_i32 : i32 to index
    %c0_31 = arith.constant 0 : index
    %c0_32 = arith.constant 0 : index
    %74 = vector.load %arg2[%73, %c0_31, %c0_32] : memref<8x8x128xbf16, #tpu.memory_space<vmem>>, vector<1x8x128xbf16>
    %75 = vector.shape_cast %74 : vector<1x8x128xbf16> to vector<8x128xbf16>
    %76 = arith.extf %75 : vector<8x128xbf16> to vector<8x128xf32>
    %cst_33 = arith.constant dense<0.000000e+00> : vector<8x128xf32>
    %77 = tpu.matmul %68, %3, %cst_33 {dimension_numbers = #tpu.dot_dimension_numbers<[1], [0], [0], [1], [0, 0, 1, 1], [], []>} : vector<8x128xbf16>, vector<128x128xbf16>, vector<8x128xf32> -> vector<8x128xf32>
    %78 = arith.addf %76, %77 : vector<8x128xf32>
    %79 = arith.addf %78, %6 : vector<8x128xf32>
    %80 = math.tanh %79 : vector<8x128xf32>
    %81 = arith.truncf %80 : vector<8x128xf32> to vector<8x128xbf16>
    %82 = arith.index_cast %c5_i32 : i32 to index
    %c0_34 = arith.constant 0 : index
    %c0_35 = arith.constant 0 : index
    %83 = vector.load %arg5[%82, %c0_34, %c0_35] : memref<8x8x128xbf16, #tpu.memory_space<vmem>>, vector<1x8x128xbf16>
    %84 = vector.shape_cast %83 : vector<1x8x128xbf16> to vector<8x128xbf16>
    %85 = vector.shape_cast %81 : vector<8x128xbf16> to vector<1x8x128xbf16>
    tpu.vector_store %arg5[%82, %c0_34, %c0_35], %85 {strides = array<i32>} : memref<8x8x128xbf16, #tpu.memory_space<vmem>>, vector<1x8x128xbf16>,
    %c6_i32 = arith.constant 6 : i32
    %86 = arith.index_cast %c6_i32 : i32 to index
    %c0_36 = arith.constant 0 : index
    %c0_37 = arith.constant 0 : index
    %87 = vector.load %arg2[%86, %c0_36, %c0_37] : memref<8x8x128xbf16, #tpu.memory_space<vmem>>, vector<1x8x128xbf16>
    %88 = vector.shape_cast %87 : vector<1x8x128xbf16> to vector<8x128xbf16>
    %89 = arith.extf %88 : vector<8x128xbf16> to vector<8x128xf32>
    %cst_38 = arith.constant dense<0.000000e+00> : vector<8x128xf32>
    %90 = tpu.matmul %81, %3, %cst_38 {dimension_numbers = #tpu.dot_dimension_numbers<[1], [0], [0], [1], [0, 0, 1, 1], [], []>} : vector<8x128xbf16>, vector<128x128xbf16>, vector<8x128xf32> -> vector<8x128xf32>
    %91 = arith.addf %89, %90 : vector<8x128xf32>
    %92 = arith.addf %91, %6 : vector<8x128xf32>
    %93 = math.tanh %92 : vector<8x128xf32>
    %94 = arith.truncf %93 : vector<8x128xf32> to vector<8x128xbf16>
    %95 = arith.index_cast %c6_i32 : i32 to index
    %c0_39 = arith.constant 0 : index
    %c0_40 = arith.constant 0 : index
    %96 = vector.load %arg5[%95, %c0_39, %c0_40] : memref<8x8x128xbf16, #tpu.memory_space<vmem>>, vector<1x8x128xbf16>
    %97 = vector.shape_cast %96 : vector<1x8x128xbf16> to vector<8x128xbf16>
    %98 = vector.shape_cast %94 : vector<8x128xbf16> to vector<1x8x128xbf16>
    tpu.vector_store %arg5[%95, %c0_39, %c0_40], %98 {strides = array<i32>} : memref<8x8x128xbf16, #tpu.memory_space<vmem>>, vector<1x8x128xbf16>,
    %c7_i32 = arith.constant 7 : i32
    %99 = arith.index_cast %c7_i32 : i32 to index
    %c0_41 = arith.constant 0 : index
    %c0_42 = arith.constant 0 : index
    %100 = vector.load %arg2[%99, %c0_41, %c0_42] : memref<8x8x128xbf16, #tpu.memory_space<vmem>>, vector<1x8x128xbf16>
    %101 = vector.shape_cast %100 : vector<1x8x128xbf16> to vector<8x128xbf16>
    %102 = arith.extf %101 : vector<8x128xbf16> to vector<8x128xf32>
    %cst_43 = arith.constant dense<0.000000e+00> : vector<8x128xf32>
    %103 = tpu.matmul %94, %3, %cst_43 {dimension_numbers = #tpu.dot_dimension_numbers<[1], [0], [0], [1], [0, 0, 1, 1], [], []>} : vector<8x128xbf16>, vector<128x128xbf16>, vector<8x128xf32> -> vector<8x128xf32>
    %104 = arith.addf %102, %103 : vector<8x128xf32>
    %105 = arith.addf %104, %6 : vector<8x128xf32>
    %106 = math.tanh %105 : vector<8x128xf32>
    %107 = arith.truncf %106 : vector<8x128xf32> to vector<8x128xbf16>
    %108 = arith.index_cast %c7_i32 : i32 to index
    %c0_44 = arith.constant 0 : index
    %c0_45 = arith.constant 0 : index
    %109 = vector.load %arg5[%108, %c0_44, %c0_45] : memref<8x8x128xbf16, #tpu.memory_space<vmem>>, vector<1x8x128xbf16>
    %110 = vector.shape_cast %109 : vector<1x8x128xbf16> to vector<8x128xbf16>
    %111 = vector.shape_cast %107 : vector<8x128xbf16> to vector<1x8x128xbf16>
    tpu.vector_store %arg5[%108, %c0_44, %c0_45], %111 {strides = array<i32>} : memref<8x8x128xbf16, #tpu.memory_space<vmem>>, vector<1x8x128xbf16>,
    %c8_i32 = arith.constant 8 : i32
    %c0_46 = arith.constant 0 : index
    %c0_47 = arith.constant 0 : index
    %112 = vector.load %arg6[%c0_46, %c0_47] : memref<8x128xbf16, #tpu.memory_space<vmem>>, vector<8x128xbf16>
    tpu.vector_store %arg6[%c0_46, %c0_47], %107 {strides = array<i32>} : memref<8x128xbf16, #tpu.memory_space<vmem>>, vector<8x128xbf16>,
    return
  }
  func.func @transform_0(%arg0: i32, %arg1: i32) -> (i32, i32, i32) {
    %c0_i32 = arith.constant 0 : i32
    %c0_i32_0 = arith.constant 0 : i32
    return %arg1, %arg0, %c0_i32 : i32, i32, i32
  }
  func.func @transform_1(%arg0: i32, %arg1: i32) -> (i32, i32) {
    %c0_i32 = arith.constant 0 : i32
    %c0_i32_0 = arith.constant 0 : i32
    %c0_i32_1 = arith.constant 0 : i32
    return %c0_i32, %c0_i32_0 : i32, i32
  }
  func.func @transform_2(%arg0: i32, %arg1: i32) -> (i32, i32) {
    %c0_i32 = arith.constant 0 : i32
    %c0_i32_0 = arith.constant 0 : i32
    %c0_i32_1 = arith.constant 0 : i32
    return %c0_i32, %c0_i32_0 : i32, i32
  }
  func.func @transform_3(%arg0: i32, %arg1: i32) -> (i32, i32, i32) {
    %c0_i32 = arith.constant 0 : i32
    %c0_i32_0 = arith.constant 0 : i32
    return %arg1, %arg0, %c0_i32 : i32, i32, i32
  }
}

</mosaic_0001>

<llo_original>
// kernel: tpu_custom_call.1
$region0: #{tpu_custom_call.1}
  #allocation0 [shape = 'u32[]', space=smem, size = 0x4, offset = 0x4, fixed_abs, tag = 'smem constant byte address 0x4 - core index']
  #allocation1 [shape = 'u32[144,128]{1,0:T(1,128)}', space=vmem, size = 0x12000, scoped, tag = 'internal scratch']
  #allocation2 [shape = 'bf16[8,128]{1,0:T(8,128)(2,1)}', space=vmem, size = 0x800, scoped, tag = 'scratch operand']
  %s0 = inlined_call_operand.hbm [shape: bf16[8,8,128], index: 0, kind: input, shape index: {}]
  %s1 = inlined_call_operand.hbm [shape: bf16[128,128], index: 1, kind: input, shape index: {}]
  %s2 = inlined_call_operand.vmem [shape: f32[1,128], index: 2, kind: input, shape index: {}]
  %s3 = inlined_call_operand.hbm [shape: bf16[8,8,128], index: 3, kind: output, shape index: {}]
  %s4 = sld [smem:[#allocation0]]
  $region34: #{tpu_custom_call.1} parent=0
    _
  %s6 = ssub.s32 1, %s4
  %s7 = scalar_select 0, %s6, %s4
  $region1: #{tpu_custom_call.1} parent=0
    #allocation3 [shape = 'u8[16384]{0}', space=vmem, size = 0x4000, scoped, tag = 'input window, operand 0, single buffered']
    #allocation4 [shape = 's32[1]{0}', space=sflag, size = 0x4, scoped, tag = 'scoped memory for tpu_custom_call.1']
    #allocation5 [shape = 's32[1]{0}', space=sflag, size = 0x4, scoped, tag = 'scoped memory for tpu_custom_call.1']
    #allocation6 [shape = 'u8[32768]{0}', space=vmem, size = 0x8000, scoped, tag = 'input window, operand 1, single buffered']
    #allocation7 [shape = 's32[1]{0}', space=sflag, size = 0x4, scoped, tag = 'scoped memory for tpu_custom_call.1']
    #allocation8 [shape = 'u8[16384]{0}', space=vmem, size = 0x4000, scoped, tag = 'output window, operand 0, single buffered']
    %8 = vsyncpa [#allocation4], 0
    %9 = vsyncpa [#allocation7], 0
    %10 = vsyncpa [#allocation5], 0
    // Predicated region
    $region2: #{tpu_custom_call.1} parent=1 // pred_check
      _
    $region3: #{tpu_custom_call.1} parent=1 // pred_check_branch
      %12 = sbr.rel (0) target = $region5
    $region4: #{tpu_custom_call.1} parent=1 // pred_region
      %s14 = ssub.s32 512, 512
      %15 = vsyncadd [#allocation4], %s14
      %s16 = sshll.u32 [#allocation3], 4
      %s17 = int_to_ptr.vmem [resolvable:$true] %s16
      %22 = dma.hbm_to_vmem [thread:$0]  %s0, 512, %s17, [#allocation4], 64, 64, 4
    $region5: #{tpu_custom_call.1} parent=1 // pred_fallthru
      _
    // Predicated region
    $region6: #{tpu_custom_call.1} parent=1 // pred_check
      _
    $region7: #{tpu_custom_call.1} parent=1 // pred_check_branch
      %24 = sbr.rel (0) target = $region9
    $region8: #{tpu_custom_call.1} parent=1 // pred_region
      %s26 = ssub.s32 1024, 1024
      %27 = vsyncadd [#allocation7], %s26
      %s28 = sshll.u32 [#allocation6], 4
      %s29 = int_to_ptr.vmem [resolvable:$true] %s28
      %34 = dma.hbm_to_vmem [thread:$0]  %s1, 1024, %s29, [#allocation7], 64, 64, 4
    $region9: #{tpu_custom_call.1} parent=1 // pred_fallthru
      _
    // Predicated region
    $region10: #{tpu_custom_call.1} parent=1 // pred_check
      _
    $region11: #{tpu_custom_call.1} parent=1 // pred_check_branch
      %36 = sbr.rel (0) target = $region13
    $region12: #{tpu_custom_call.1} parent=1 // pred_region
      _
    $region13: #{tpu_custom_call.1} parent=1 // pred_fallthru
      _
    // Predicated region
    $region14: #{tpu_custom_call.1} parent=1 // pred_check
      _
    $region15: #{tpu_custom_call.1} parent=1 // pred_check_branch
      %38 = sbr.rel (0) target = $region17
    $region16: #{tpu_custom_call.1} parent=1 // pred_region
      %39 = dma.done [#allocation4], 512
    $region17: #{tpu_custom_call.1} parent=1 // pred_fallthru
      _
    // Predicated region
    $region18: #{tpu_custom_call.1} parent=1 // pred_check
      _
    $region19: #{tpu_custom_call.1} parent=1 // pred_check_branch
      %41 = sbr.rel (0) target = $region21
    $region20: #{tpu_custom_call.1} parent=1 // pred_region
      %42 = dma.done [#allocation7], 1024
    $region21: #{tpu_custom_call.1} parent=1 // pred_fallthru
      _
    %p44 = scmp.eq.s32.totalorder 0, 0
    // Predicated region
    $region22: #{tpu_custom_call.1} parent=1 // pred_check
      %p45 = pneg %p44
    $region23: #{tpu_custom_call.1} parent=1 // pred_check_branch
      %47 = sbr.rel (%p45) target = $region25
    $region24: #{tpu_custom_call.1} parent=1 // pred_region
      %48 = vst [vmem:[#allocation2] sm:$0xf] 0
    $region25: #{tpu_custom_call.1} parent=1 // pred_fallthru
      _
    %v49 = vld [vmem:[#allocation6] sm:$0xf]
    %v50 = vld [vmem:[#allocation6 + $0x4] sm:$0xf]
    %v51 = vld [vmem:[#allocation6 + $0x8] sm:$0xf]
    %v52 = vld [vmem:[#allocation6 + $0xc] sm:$0xf]
    %v53 = vld [vmem:[#allocation6 + $0x10] sm:$0xf]
    %v54 = vld [vmem:[#allocation6 + $0x14] sm:$0xf]
    %v55 = vld [vmem:[#allocation6 + $0x18] sm:$0xf]
    %v56 = vld [vmem:[#allocation6 + $0x1c] sm:$0xf]
    %v57 = vld [vmem:[#allocation6 + $0x20] sm:$0xf]
    %v58 = vld [vmem:[#allocation6 + $0x24] sm:$0xf]
    %v59 = vld [vmem:[#allocation6 + $0x28] sm:$0xf]
    %v60 = vld [vmem:[#allocation6 + $0x2c] sm:$0xf]
    %v61 = vld [vmem:[#allocation6 + $0x30] sm:$0xf]
    %v62 = vld [vmem:[#allocation6 + $0x34] sm:$0xf]
    %v63 = vld [vmem:[#allocation6 + $0x38] sm:$0xf]
    %v64 = vld [vmem:[#allocation6 + $0x3c] sm:$0xf]
    %v65 = vld [vmem:[%s2] sm:$0x1]
    %v67 = vlaneseq
    %v68 = vshrl.u32 %v67, 7
    %v69 = vsub.s32 0, %v68
    %v70 = vrot.slane %v65, %v69
    %v72 = vld [vmem:[#allocation2] sm:$0xf]
    %v73 = vld [vmem:[#allocation3] sm:$0xf]
    %v74 = vunpack.c.l.bf16 %v73
    %v91 = vunpack.c.l.b16 %v49
    %v92 = vunpack.c.l.b16 %v50
    %v93 = vunpack.c.l.b16 %v51
    %v94 = vunpack.c.l.b16 %v52
    %v95 = vunpack.c.l.b16 %v53
    %v96 = vunpack.c.l.b16 %v54
    %v97 = vunpack.c.l.b16 %v55
    %v98 = vunpack.c.l.b16 %v56
    %v99 = vunpack.c.l.b16 %v57
    %v100 = vunpack.c.l.b16 %v58
    %v101 = vunpack.c.l.b16 %v59
    %v102 = vunpack.c.l.b16 %v60
    %v103 = vunpack.c.l.b16 %v61
    %v104 = vunpack.c.l.b16 %v62
    %v105 = vunpack.c.l.b16 %v63
    %v106 = vunpack.c.l.b16 %v64
    %v107 = vpack.c.b16 %v92, %v91
    %v108 = vpack.c.b16 %v94, %v93
    %v109 = vpack.c.b16 %v96, %v95
    %v110 = vpack.c.b16 %v98, %v97
    %v111 = vpack.c.b16 %v100, %v99
    %v112 = vpack.c.b16 %v102, %v101
    %v113 = vpack.c.b16 %v104, %v103
    %v114 = vpack.c.b16 %v106, %v105
    %123 = vmatprep.subr.bf16.mxu0 0
    %124 = vmatpush1.bf16.msra.mxu0 %v114
    %125 = vmatprep.subr.bf16.mxu0 0
    %126 = vmatpush1.bf16.msra.mxu0 %v113
    %127 = vmatprep.subr.bf16.mxu0 0
    %128 = vmatpush1.bf16.msra.mxu0 %v112
    %129 = vmatprep.subr.bf16.mxu0 0
    %130 = vmatpush1.bf16.msra.mxu0 %v111
    %131 = vmatprep.subr.bf16.mxu0 0
    %132 = vmatpush1.bf16.msra.mxu0 %v110
    %133 = vmatprep.subr.bf16.mxu0 0
    %134 = vmatpush1.bf16.msra.mxu0 %v109
    %135 = vmatprep.subr.bf16.mxu0 0
    %136 = vmatpush1.bf16.msra.mxu0 %v108
    %137 = vmatprep.subr.bf16.mxu0 0
    %138 = vmatpush1.bf16.msra.mxu0 %v107
    %139 = vmatprep.subr.bf16.mxu0 0
    %140 = vmatpush2.bf16.msra.mxu0 0
    %141 = vmatprep.subr.bf16.mxu0 0
    %142 = vmatpush2.bf16.msra.mxu0 0
    %143 = vmatprep.subr.bf16.mxu0 0
    %144 = vmatpush2.bf16.msra.mxu0 0
    %145 = vmatprep.subr.bf16.mxu0 0
    %146 = vmatpush2.bf16.msra.mxu0 0
    %147 = vmatprep.subr.bf16.mxu0 0
    %148 = vmatpush2.bf16.msra.mxu0 0
    %149 = vmatprep.subr.bf16.mxu0 0
    %150 = vmatpush2.bf16.msra.mxu0 0
    %151 = vmatprep.subr.bf16.mxu0 0
    %152 = vmatpush2.bf16.msra.mxu0 0
    %153 = vmatprep.subr.bf16.mxu0 0
    %154 = vmatpush2.bf16.msra.mxu0 0
    %155 = vmatprep.mubr.bf16.mxu0 0
    %156 = vmatmul.mubr.bf16.gmra.mxu0 %v72
    %v157 = vpop.f32.mrf.mxu0
    %v158 = vadd.f32 0.0, %v157
    %v159 = vpop.f32.mrf.mxu0
    %v160 = vpop.f32.mrf.mxu0
    %v161 = vpop.f32.mrf.mxu0
    %162 = vdwg.mxu0
    %v163 = vadd.f32 %v74, %v158
    %v164 = vadd.f32 %v163, %v70
    %v165 = vtanh.pop %v164
    %v166 = vpack.c.bf16 %v165, %v165
    %167 = vst [vmem:[#allocation8] sm:$0xf] %v166
    %s168 = scalar_lea.vmem [#allocation3], 4
    %v169 = vld [vmem:[%s168] sm:$0xf]
    %v170 = vunpack.c.l.bf16 %v169
    %171 = vmatprep.subr.bf16.mxu0 0
    %172 = vmatpush1.bf16.msra.mxu0 %v114
    %173 = vmatprep.subr.bf16.mxu0 0
    %174 = vmatpush1.bf16.msra.mxu0 %v113
    %175 = vmatprep.subr.bf16.mxu0 0
    %176 = vmatpush1.bf16.msra.mxu0 %v112
    %177 = vmatprep.subr.bf16.mxu0 0
    %178 = vmatpush1.bf16.msra.mxu0 %v111
    %179 = vmatprep.subr.bf16.mxu0 0
    %180 = vmatpush1.bf16.msra.mxu0 %v110
    %181 = vmatprep.subr.bf16.mxu0 0
    %182 = vmatpush1.bf16.msra.mxu0 %v109
    %183 = vmatprep.subr.bf16.mxu0 0
    %184 = vmatpush1.bf16.msra.mxu0 %v108
    %185 = vmatprep.subr.bf16.mxu0 0
    %186 = vmatpush1.bf16.msra.mxu0 %v107
    %187 = vmatprep.subr.bf16.mxu0 0
    %188 = vmatpush2.bf16.msra.mxu0 0
    %189 = vmatprep.subr.bf16.mxu0 0
    %190 = vmatpush2.bf16.msra.mxu0 0
    %191 = vmatprep.subr.bf16.mxu0 0
    %192 = vmatpush2.bf16.msra.mxu0 0
    %193 = vmatprep.subr.bf16.mxu0 0
    %194 = vmatpush2.bf16.msra.mxu0 0
    %195 = vmatprep.subr.bf16.mxu0 0
    %196 = vmatpush2.bf16.msra.mxu0 0
    %197 = vmatprep.subr.bf16.mxu0 0
    %198 = vmatpush2.bf16.msra.mxu0 0
    %199 = vmatprep.subr.bf16.mxu0 0
    %200 = vmatpush2.bf16.msra.mxu0 0
    %201 = vmatprep.subr.bf16.mxu0 0
    %202 = vmatpush2.bf16.msra.mxu0 0
    %203 = vmatprep.mubr.bf16.mxu0 0
    %204 = vmatmul.mubr.bf16.gmra.mxu0 %v166
    %v205 = vpop.f32.mrf.mxu0
    %v206 = vadd.f32 0.0, %v205
    %v207 = vpop.f32.mrf.mxu0
    %v208 = vpop.f32.mrf.mxu0
    %v209 = vpop.f32.mrf.mxu0
    %210 = vdwg.mxu0
    %v211 = vadd.f32 %v170, %v206
    %v212 = vadd.f32 %v211, %v70
    %v213 = vtanh.pop %v212
    %v214 = vpack.c.bf16 %v213, %v213
    %s215 = scalar_lea.vmem [#allocation8], 4
    %216 = vst [vmem:[%s215] sm:$0xf] %v214
    %s217 = scalar_lea.vmem [#allocation3], 8
    %v218 = vld [vmem:[%s217] sm:$0xf]
    %v219 = vunpack.c.l.bf16 %v218
    %220 = vmatprep.subr.bf16.mxu0 0
    %221 = vmatpush1.bf16.msra.mxu0 %v114
    %222 = vmatprep.subr.bf16.mxu0 0
    %223 = vmatpush1.bf16.msra.mxu0 %v113
    %224 = vmatprep.subr.bf16.mxu0 0
    %225 = vmatpush1.bf16.msra.mxu0 %v112
    %226 = vmatprep.subr.bf16.mxu0 0
    %227 = vmatpush1.bf16.msra.mxu0 %v111
    %228 = vmatprep.subr.bf16.mxu0 0
    %229 = vmatpush1.bf16.msra.mxu0 %v110
    %230 = vmatprep.subr.bf16.mxu0 0
    %231 = vmatpush1.bf16.msra.mxu0 %v109
    %232 = vmatprep.subr.bf16.mxu0 0
    %233 = vmatpush1.bf16.msra.mxu0 %v108
    %234 = vmatprep.subr.bf16.mxu0 0
    %235 = vmatpush1.bf16.msra.mxu0 %v107
    %236 = vmatprep.subr.bf16.mxu0 0
    %237 = vmatpush2.bf16.msra.mxu0 0
    %238 = vmatprep.subr.bf16.mxu0 0
    %239 = vmatpush2.bf16.msra.mxu0 0
    %240 = vmatprep.subr.bf16.mxu0 0
    %241 = vmatpush2.bf16.msra.mxu0 0
    %242 = vmatprep.subr.bf16.mxu0 0
    %243 = vmatpush2.bf16.msra.mxu0 0
    %244 = vmatprep.subr.bf16.mxu0 0
    %245 = vmatpush2.bf16.msra.mxu0 0
    %246 = vmatprep.subr.bf16.mxu0 0
    %247 = vmatpush2.bf16.msra.mxu0 0
    %248 = vmatprep.subr.bf16.mxu0 0
    %249 = vmatpush2.bf16.msra.mxu0 0
    %250 = vmatprep.subr.bf16.mxu0 0
    %251 = vmatpush2.bf16.msra.mxu0 0
    %252 = vmatprep.mubr.bf16.mxu0 0
    %253 = vmatmul.mubr.bf16.gmra.mxu0 %v214
    %v254 = vpop.f32.mrf.mxu0
    %v255 = vadd.f32 0.0, %v254
    %v256 = vpop.f32.mrf.mxu0
    %v257 = vpop.f32.mrf.mxu0
    %v258 = vpop.f32.mrf.mxu0
    %259 = vdwg.mxu0
    %v260 = vadd.f32 %v219, %v255
    %v261 = vadd.f32 %v260, %v70
    %v262 = vtanh.pop %v261
    %v263 = vpack.c.bf16 %v262, %v262
    %s264 = scalar_lea.vmem [#allocation8], 8
    %265 = vst [vmem:[%s264] sm:$0xf] %v263
    %s266 = scalar_lea.vmem [#allocation3], 12
    %v267 = vld [vmem:[%s266] sm:$0xf]
    %v268 = vunpack.c.l.bf16 %v267
    %269 = vmatprep.subr.bf16.mxu0 0
    %270 = vmatpush1.bf16.msra.mxu0 %v114
    %271 = vmatprep.subr.bf16.mxu0 0
    %272 = vmatpush1.bf16.msra.mxu0 %v113
    %273 = vmatprep.subr.bf16.mxu0 0
    %274 = vmatpush1.bf16.msra.mxu0 %v112
    %275 = vmatprep.subr.bf16.mxu0 0
    %276 = vmatpush1.bf16.msra.mxu0 %v111
    %277 = vmatprep.subr.bf16.mxu0 0
    %278 = vmatpush1.bf16.msra.mxu0 %v110
    %279 = vmatprep.subr.bf16.mxu0 0
    %280 = vmatpush1.bf16.msra.mxu0 %v109
    %281 = vmatprep.subr.bf16.mxu0 0
    %282 = vmatpush1.bf16.msra.mxu0 %v108
    %283 = vmatprep.subr.bf16.mxu0 0
    %284 = vmatpush1.bf16.msra.mxu0 %v107
    %285 = vmatprep.subr.bf16.mxu0 0
    %286 = vmatpush2.bf16.msra.mxu0 0
    %287 = vmatprep.subr.bf16.mxu0 0
    %288 = vmatpush2.bf16.msra.mxu0 0
    %289 = vmatprep.subr.bf16.mxu0 0
    %290 = vmatpush2.bf16.msra.mxu0 0
    %291 = vmatprep.subr.bf16.mxu0 0
    %292 = vmatpush2.bf16.msra.mxu0 0
    %293 = vmatprep.subr.bf16.mxu0 0
    %294 = vmatpush2.bf16.msra.mxu0 0
    %295 = vmatprep.subr.bf16.mxu0 0
    %296 = vmatpush2.bf16.msra.mxu0 0
    %297 = vmatprep.subr.bf16.mxu0 0
    %298 = vmatpush2.bf16.msra.mxu0 0
    %299 = vmatprep.subr.bf16.mxu0 0
    %300 = vmatpush2.bf16.msra.mxu0 0
    %301 = vmatprep.mubr.bf16.mxu0 0
    %302 = vmatmul.mubr.bf16.gmra.mxu0 %v263
    %v303 = vpop.f32.mrf.mxu0
    %v304 = vadd.f32 0.0, %v303
    %v305 = vpop.f32.mrf.mxu0
    %v306 = vpop.f32.mrf.mxu0
    %v307 = vpop.f32.mrf.mxu0
    %308 = vdwg.mxu0
    %v309 = vadd.f32 %v268, %v304
    %v310 = vadd.f32 %v309, %v70
    %v311 = vtanh.pop %v310
    %v312 = vpack.c.bf16 %v311, %v311
    %s313 = scalar_lea.vmem [#allocation8], 12
    %314 = vst [vmem:[%s313] sm:$0xf] %v312
    %s315 = scalar_lea.vmem [#allocation3], 16
    %v316 = vld [vmem:[%s315] sm:$0xf]
    %v317 = vunpack.c.l.bf16 %v316
    %318 = vmatprep.subr.bf16.mxu0 0
    %319 = vmatpush1.bf16.msra.mxu0 %v114
    %320 = vmatprep.subr.bf16.mxu0 0
    %321 = vmatpush1.bf16.msra.mxu0 %v113
    %322 = vmatprep.subr.bf16.mxu0 0
    %323 = vmatpush1.bf16.msra.mxu0 %v112
    %324 = vmatprep.subr.bf16.mxu0 0
    %325 = vmatpush1.bf16.msra.mxu0 %v111
    %326 = vmatprep.subr.bf16.mxu0 0
    %327 = vmatpush1.bf16.msra.mxu0 %v110
    %328 = vmatprep.subr.bf16.mxu0 0
    %329 = vmatpush1.bf16.msra.mxu0 %v109
    %330 = vmatprep.subr.bf16.mxu0 0
    %331 = vmatpush1.bf16.msra.mxu0 %v108
    %332 = vmatprep.subr.bf16.mxu0 0
    %333 = vmatpush1.bf16.msra.mxu0 %v107
    %334 = vmatprep.subr.bf16.mxu0 0
    %335 = vmatpush2.bf16.msra.mxu0 0
    %336 = vmatprep.subr.bf16.mxu0 0
    %337 = vmatpush2.bf16.msra.mxu0 0
    %338 = vmatprep.subr.bf16.mxu0 0
    %339 = vmatpush2.bf16.msra.mxu0 0
    %340 = vmatprep.subr.bf16.mxu0 0
    %341 = vmatpush2.bf16.msra.mxu0 0
    %342 = vmatprep.subr.bf16.mxu0 0
    %343 = vmatpush2.bf16.msra.mxu0 0
    %344 = vmatprep.subr.bf16.mxu0 0
    %345 = vmatpush2.bf16.msra.mxu0 0
    %346 = vmatprep.subr.bf16.mxu0 0
    %347 = vmatpush2.bf16.msra.mxu0 0
    %348 = vmatprep.subr.bf16.mxu0 0
    %349 = vmatpush2.bf16.msra.mxu0 0
    %350 = vmatprep.mubr.bf16.mxu0 0
    %351 = vmatmul.mubr.bf16.gmra.mxu0 %v312
    %v352 = vpop.f32.mrf.mxu0
    %v353 = vadd.f32 0.0, %v352
    %v354 = vpop.f32.mrf.mxu0
    %v355 = vpop.f32.mrf.mxu0
    %v356 = vpop.f32.mrf.mxu0
    %357 = vdwg.mxu0
    %v358 = vadd.f32 %v317, %v353
    %v359 = vadd.f32 %v358, %v70
    %v360 = vtanh.pop %v359
    %v361 = vpack.c.bf16 %v360, %v360
    %s362 = scalar_lea.vmem [#allocation8], 16
    %363 = vst [vmem:[%s362] sm:$0xf] %v361
    %s364 = scalar_lea.vmem [#allocation3], 20
    %v365 = vld [vmem:[%s364] sm:$0xf]
    %v366 = vunpack.c.l.bf16 %v365
    %367 = vmatprep.subr.bf16.mxu0 0
    %368 = vmatpush1.bf16.msra.mxu0 %v114
    %369 = vmatprep.subr.bf16.mxu0 0
    %370 = vmatpush1.bf16.msra.mxu0 %v113
    %371 = vmatprep.subr.bf16.mxu0 0
    %372 = vmatpush1.bf16.msra.mxu0 %v112
    %373 = vmatprep.subr.bf16.mxu0 0
    %374 = vmatpush1.bf16.msra.mxu0 %v111
    %375 = vmatprep.subr.bf16.mxu0 0
    %376 = vmatpush1.bf16.msra.mxu0 %v110
    %377 = vmatprep.subr.bf16.mxu0 0
    %378 = vmatpush1.bf16.msra.mxu0 %v109
    %379 = vmatprep.subr.bf16.mxu0 0
    %380 = vmatpush1.bf16.msra.mxu0 %v108
    %381 = vmatprep.subr.bf16.mxu0 0
    %382 = vmatpush1.bf16.msra.mxu0 %v107
    %383 = vmatprep.subr.bf16.mxu0 0
    %384 = vmatpush2.bf16.msra.mxu0 0
    %385 = vmatprep.subr.bf16.mxu0 0
    %386 = vmatpush2.bf16.msra.mxu0 0
    %387 = vmatprep.subr.bf16.mxu0 0
    %388 = vmatpush2.bf16.msra.mxu0 0
    %389 = vmatprep.subr.bf16.mxu0 0
    %390 = vmatpush2.bf16.msra.mxu0 0
    %391 = vmatprep.subr.bf16.mxu0 0
    %392 = vmatpush2.bf16.msra.mxu0 0
    %393 = vmatprep.subr.bf16.mxu0 0
    %394 = vmatpush2.bf16.msra.mxu0 0
    %395 = vmatprep.subr.bf16.mxu0 0
    %396 = vmatpush2.bf16.msra.mxu0 0
    %397 = vmatprep.subr.bf16.mxu0 0
    %398 = vmatpush2.bf16.msra.mxu0 0
    %399 = vmatprep.mubr.bf16.mxu0 0
    %400 = vmatmul.mubr.bf16.gmra.mxu0 %v361
    %v401 = vpop.f32.mrf.mxu0
    %v402 = vadd.f32 0.0, %v401
    %v403 = vpop.f32.mrf.mxu0
    %v404 = vpop.f32.mrf.mxu0
    %v405 = vpop.f32.mrf.mxu0
    %406 = vdwg.mxu0
    %v407 = vadd.f32 %v366, %v402
    %v408 = vadd.f32 %v407, %v70
    %v409 = vtanh.pop %v408
    %v410 = vpack.c.bf16 %v409, %v409
    %s411 = scalar_lea.vmem [#allocation8], 20
    %412 = vst [vmem:[%s411] sm:$0xf] %v410
    %s413 = scalar_lea.vmem [#allocation3], 24
    %v414 = vld [vmem:[%s413] sm:$0xf]
    %v415 = vunpack.c.l.bf16 %v414
    %416 = vmatprep.subr.bf16.mxu0 0
    %417 = vmatpush1.bf16.msra.mxu0 %v114
    %418 = vmatprep.subr.bf16.mxu0 0
    %419 = vmatpush1.bf16.msra.mxu0 %v113
    %420 = vmatprep.subr.bf16.mxu0 0
    %421 = vmatpush1.bf16.msra.mxu0 %v112
    %422 = vmatprep.subr.bf16.mxu0 0
    %423 = vmatpush1.bf16.msra.mxu0 %v111
    %424 = vmatprep.subr.bf16.mxu0 0
    %425 = vmatpush1.bf16.msra.mxu0 %v110
    %426 = vmatprep.subr.bf16.mxu0 0
    %427 = vmatpush1.bf16.msra.mxu0 %v109
    %428 = vmatprep.subr.bf16.mxu0 0
    %429 = vmatpush1.bf16.msra.mxu0 %v108
    %430 = vmatprep.subr.bf16.mxu0 0
    %431 = vmatpush1.bf16.msra.mxu0 %v107
    %432 = vmatprep.subr.bf16.mxu0 0
    %433 = vmatpush2.bf16.msra.mxu0 0
    %434 = vmatprep.subr.bf16.mxu0 0
    %435 = vmatpush2.bf16.msra.mxu0 0
    %436 = vmatprep.subr.bf16.mxu0 0
    %437 = vmatpush2.bf16.msra.mxu0 0
    %438 = vmatprep.subr.bf16.mxu0 0
    %439 = vmatpush2.bf16.msra.mxu0 0
    %440 = vmatprep.subr.bf16.mxu0 0
    %441 = vmatpush2.bf16.msra.mxu0 0
    %442 = vmatprep.subr.bf16.mxu0 0
    %443 = vmatpush2.bf16.msra.mxu0 0
    %444 = vmatprep.subr.bf16.mxu0 0
    %445 = vmatpush2.bf16.msra.mxu0 0
    %446 = vmatprep.subr.bf16.mxu0 0
    %447 = vmatpush2.bf16.msra.mxu0 0
    %448 = vmatprep.mubr.bf16.mxu0 0
    %449 = vmatmul.mubr.bf16.gmra.mxu0 %v410
    %v450 = vpop.f32.mrf.mxu0
    %v451 = vadd.f32 0.0, %v450
    %v452 = vpop.f32.mrf.mxu0
    %v453 = vpop.f32.mrf.mxu0
    %v454 = vpop.f32.mrf.mxu0
    %455 = vdwg.mxu0
    %v456 = vadd.f32 %v415, %v451
    %v457 = vadd.f32 %v456, %v70
    %v458 = vtanh.pop %v457
    %v459 = vpack.c.bf16 %v458, %v458
    %s460 = scalar_lea.vmem [#allocation8], 24
    %461 = vst [vmem:[%s460] sm:$0xf] %v459
    %s462 = scalar_lea.vmem [#allocation3], 28
    %v463 = vld [vmem:[%s462] sm:$0xf]
    %v464 = vunpack.c.l.bf16 %v463
    %465 = vmatprep.subr.bf16.mxu0 0
    %466 = vmatpush1.bf16.msra.mxu0 %v114
    %467 = vmatprep.subr.bf16.mxu0 0
    %468 = vmatpush1.bf16.msra.mxu0 %v113
    %469 = vmatprep.subr.bf16.mxu0 0
    %470 = vmatpush1.bf16.msra.mxu0 %v112
    %471 = vmatprep.subr.bf16.mxu0 0
    %472 = vmatpush1.bf16.msra.mxu0 %v111
    %473 = vmatprep.subr.bf16.mxu0 0
    %474 = vmatpush1.bf16.msra.mxu0 %v110
    %475 = vmatprep.subr.bf16.mxu0 0
    %476 = vmatpush1.bf16.msra.mxu0 %v109
    %477 = vmatprep.subr.bf16.mxu0 0
    %478 = vmatpush1.bf16.msra.mxu0 %v108
    %479 = vmatprep.subr.bf16.mxu0 0
    %480 = vmatpush1.bf16.msra.mxu0 %v107
    %481 = vmatprep.subr.bf16.mxu0 0
    %482 = vmatpush2.bf16.msra.mxu0 0
    %483 = vmatprep.subr.bf16.mxu0 0
    %484 = vmatpush2.bf16.msra.mxu0 0
    %485 = vmatprep.subr.bf16.mxu0 0
    %486 = vmatpush2.bf16.msra.mxu0 0
    %487 = vmatprep.subr.bf16.mxu0 0
    %488 = vmatpush2.bf16.msra.mxu0 0
    %489 = vmatprep.subr.bf16.mxu0 0
    %490 = vmatpush2.bf16.msra.mxu0 0
    %491 = vmatprep.subr.bf16.mxu0 0
    %492 = vmatpush2.bf16.msra.mxu0 0
    %493 = vmatprep.subr.bf16.mxu0 0
    %494 = vmatpush2.bf16.msra.mxu0 0
    %495 = vmatprep.subr.bf16.mxu0 0
    %496 = vmatpush2.bf16.msra.mxu0 0
    %497 = vmatprep.mubr.bf16.mxu0 0
    %498 = vmatmul.mubr.bf16.gmra.mxu0 %v459
    %v499 = vpop.f32.mrf.mxu0
    %v500 = vadd.f32 0.0, %v499
    %v501 = vpop.f32.mrf.mxu0
    %v502 = vpop.f32.mrf.mxu0
    %v503 = vpop.f32.mrf.mxu0
    %504 = vdwg.mxu0
    %v505 = vadd.f32 %v464, %v500
    %v506 = vadd.f32 %v505, %v70
    %v507 = vtanh.pop %v506
    %v508 = vpack.c.bf16 %v507, %v507
    %s509 = scalar_lea.vmem [#allocation8], 28
    %510 = vst [vmem:[%s509] sm:$0xf] %v508
    %511 = vst [vmem:[#allocation2] sm:$0xf] %v508
    // Predicated region
    $region26: #{tpu_custom_call.1} parent=1 // pred_check
      _
    $region27: #{tpu_custom_call.1} parent=1 // pred_check_branch
      %513 = sbr.rel (0) target = $region29
    $region28: #{tpu_custom_call.1} parent=1 // pred_region
      %s515 = ssub.s32 512, 512
      %516 = vsyncadd [#allocation5], %s515
      %s517 = sshll.u32 [#allocation8], 4
      %s518 = int_to_ptr.vmem [resolvable:$true] %s517
      %523 = dma.vmem_to_hbm [thread:$0]  %s518, 512, %s3, [#allocation5], 64, 64, 4
    $region29: #{tpu_custom_call.1} parent=1 // pred_fallthru
      _
    // Predicated region
    $region30: #{tpu_custom_call.1} parent=1 // pred_check
      _
    $region31: #{tpu_custom_call.1} parent=1 // pred_check_branch
      %525 = sbr.rel (0) target = $region33
    $region32: #{tpu_custom_call.1} parent=1 // pred_region
      %526 = dma.done [#allocation5], 512
    $region33: #{tpu_custom_call.1} parent=1 // pred_fallthru
      _
    %527 = vsyncpa [#allocation4], 1
    %528 = vsyncpa [#allocation7], 1
    %529 = vsyncpa [#allocation5], 1

</llo_original>
